<compile_context>
chip_gen: v7x
topology: tpu7x:2x2x1
jax: 0.10.0
libtpu: 0.0.40
codegen_flags: <defaults>
</compile_context>

<pallas_src>
import jax
import jax.numpy as jnp
from jax import lax
from jax.experimental import pallas as pl
from jax.experimental.pallas import tpu as pltpu


def _align8(x):
    return ((x + 7) // 8) * 8


# ------------------------------ kernel helpers -------------------------------

def _fir_drive(u, btaps):
    """Vectorized-over-T FIR drive for a bank of independent SISO chains.

    u:     (T, NC)   chain inputs (lane-dense over chains)
    btaps: (n_b, NC) numerator taps per chain
    returns (T, NC): drive[t, c] = sum_k btaps[k, c] * u[t-k, c]  (zero init state)
    """
    T, NC = u.shape
    n_b = btaps.shape[0]
    d = btaps[0:1, :] * u
    if n_b > 1:
        # single small zero-pad concat per stage (2 total in the whole kernel)
        u_pad = jnp.concatenate(
            [jnp.zeros((n_b - 1, NC), u.dtype), u], axis=0)
        for k in range(1, n_b):
            d = d + btaps[k:k + 1, :] * u_pad[n_b - 1 - k: n_b - 1 - k + T, :]
    return d


def _iir(drive, nataps, s_ref):
    """AR (denominator) recursion for a bank of independent chains sharing one
    serial time loop.  Per step: 1 row extract + n_a FMAs + 1 lane-dense row
    store; lag state lives in the loop carry (registers), not memory.

    drive:  (T, NC)  FIR drive (value)
    nataps: (n_a, NC) NEGATED denominator taps, or None if n_a == 0
    s_ref:  (T, NC)  VMEM scratch receiving the filtered output
    returns (T, NC) filtered chain outputs.
    """
    T, NC = drive.shape
    if nataps is None:
        s_ref[...] = drive
        return drive
    n_a = nataps.shape[0]
    taps = [nataps[j:j + 1, :] for j in range(n_a)]              # hoisted once
    lags = [jnp.zeros((1, NC), drive.dtype) for _ in range(n_a)]
    # TODO(synk): for large T switch to lax.fori_loop with a bounded unroll
    # factor (4-8) to cap bundle count and carry live ranges.
    for t in range(T):                                           # T=16: full unroll
        y_t = drive[t:t + 1, :]
        for tap, lag in zip(taps, lags):
            y_t = y_t + tap * lag                                # - a_j * y[t-1-j]
        s_ref[t:t + 1, :] = y_t
        lags = [y_t] + lags[:-1]
    return s_ref[...]


# -------------------------------- wrapper -------------------------------------

def dynonet_forward(x_in, params):
    """my_dynoNet.forward:  y = G2(F(G1(x_in))) + Glin(x_in).   x_in: (B, T, Cin)."""
    g1, f, g2, glin = params
    b1c, a1c = g1                     # (4, Cin, n_b), (4, Cin, n_a)
    w1, b1, w2, b2 = f                # (4, H), (1, H), (H, 3), (1, 3)
    b2c, a2c = g2                     # (Cout, 3, n_b), (Cout, 3, n_a)
    blc, alc = glin                   # (Cout, Cin, n_b), (Cout, Cin, n_a)

    B, T, Cin = x_in.shape
    C1 = b1c.shape[0]                 # G1 out channels (4)
    CF = b2c.shape[1]                 # F out channels / G2 in channels (3)
    Cout = b2c.shape[0]
    H = w1.shape[1]
    n_b = b1c.shape[-1]
    n_a = a1c.shape[-1]

    NC_G1 = Cin * C1 * B              # stage-1 chains for G1          (= 16)
    NC_GL = Cin * Cout * B            # stage-1 chains for Glin        (=  8)
    NC1 = NC_G1 + NC_GL               #                                (= 24)
    NC2 = CF * Cout * B               # stage-2 chains (G2)            (= 12)
    HB = H * B                        # MLP hidden lanes               (= 64)
    f32 = jnp.float32

    # ---- stage-1 chain inputs: u replicated per (in-ch, out-ch, batch). -------
    u_t = jnp.transpose(x_in, (1, 2, 0)).astype(f32)              # (T, Cin, B)
    u_g1 = jnp.broadcast_to(u_t[:, :, None, :], (T, Cin, C1, B)).reshape(T, NC_G1)
    u_gl = jnp.broadcast_to(u_t[:, :, None, :], (T, Cin, Cout, B)).reshape(T, NC_GL)
    u_chain = jnp.concatenate([u_g1, u_gl], axis=1)               # (T, NC1)

    # ---- per-chain taps: chain index = i*(Co*B) + o*B + b. ---------------------
    def chain_taps(coef):             # (Co, Ci, n) -> (n, Ci*Co*B)
        Co, Ci, n = coef.shape
        c = jnp.transpose(coef, (2, 1, 0))                        # (n, Ci, Co)
        c = jnp.broadcast_to(c[:, :, :, None], (n, Ci, Co, B))
        return c.reshape(n, Ci * Co * B).astype(f32)

    bt1 = jnp.concatenate([chain_taps(b1c), chain_taps(blc)], axis=1)    # (n_b, NC1)
    bt2 = chain_taps(b2c)                                                # (n_b, NC2)
    nat1 = -jnp.concatenate([chain_taps(a1c), chain_taps(alc)], axis=1)  # (n_a, NC1)
    nat2 = -chain_taps(a2c)                                              # (n_a, NC2)

    # ---- MLP as block-diagonal (per-batch) matrices for the MXU. --------------
    eyeB = jnp.eye(B, dtype=f32)
    # w1mat[(c,b'),(j,b)] = W1[c,j] * (b'==b)
    w1mat = (w1.astype(f32)[:, None, :, None] * eyeB[None, :, None, :]
             ).reshape(C1 * B, HB)
    b1vec = jnp.broadcast_to(b1.astype(f32)[0][:, None], (H, B)).reshape(HB)
    # w2mat[(j,b),(f,o,b')] = W2[j,f] * (b==b')  -- Cout replication for G2 chains
    w2mat = jnp.broadcast_to(
        w2.astype(f32)[:, None, :, None, None] * eyeB[None, :, None, None, :],
        (H, B, CF, Cout, B)).reshape(HB, NC2)
    b2vec = jnp.broadcast_to(b2.astype(f32)[0][:, None, None],
                             (CF, Cout, B)).reshape(NC2)

    # ---- pack every constant into ONE params slab (2 input DMAs total). -------
    R_W1 = _align8(n_b + n_a)
    R_B1 = R_W1 + C1 * B
    R_W2 = _align8(R_B1 + 1)
    R_B2 = R_W2 + HB
    ROWS = _align8(R_B2 + 1)
    PW = max(HB, NC1 + NC2)

    p = jnp.zeros((ROWS, PW), f32)
    p = p.at[0:n_b, 0:NC1].set(bt1)
    p = p.at[0:n_b, NC1:NC1 + NC2].set(bt2)
    if n_a > 0:
        p = p.at[n_b:n_b + n_a, 0:NC1].set(nat1)
        p = p.at[n_b:n_b + n_a, NC1:NC1 + NC2].set(nat2)
    p = p.at[R_W1:R_W1 + C1 * B, 0:HB].set(w1mat)
    p = p.at[R_B1, 0:HB].set(b1vec)
    p = p.at[R_W2:R_W2 + HB, 0:NC2].set(w2mat)
    p = p.at[R_B2, 0:NC2].set(b2vec)

    # ------------------------------ fused kernel -------------------------------
    def kernel(u_ref, p_ref, y_ref, s1_ref, s2_ref):
        u = u_ref[...]                                           # (T, NC1)

        taps = p_ref[0:n_b + n_a, :]                             # (n_b+n_a, PW)
        bt1_v = taps[0:n_b, 0:NC1]
        bt2_v = taps[0:n_b, NC1:NC1 + NC2]
        nat1_v = taps[n_b:n_b + n_a, 0:NC1] if n_a > 0 else None
        nat2_v = taps[n_b:n_b + n_a, NC1:NC1 + NC2] if n_a > 0 else None

        # ---- stage 1: G1 + Glin chains (one FIR pass, one shared AR loop). ----
        y1 = _iir(_fir_drive(u, bt1_v), nat1_v, s1_ref)          # (T, NC1)

        # sum SISO outputs over input channels (static lane slices)
        x1 = y1[:, 0:C1 * B]                                     # (T, C1*B)
        for i in range(1, Cin):
            x1 = x1 + y1[:, i * C1 * B:(i + 1) * C1 * B]
        y_lin = y1[:, NC_G1:NC_G1 + Cout * B]                    # (T, Cout*B)
        for i in range(1, Cin):
            lo = NC_G1 + i * Cout * B
            y_lin = y_lin + y1[:, lo:lo + Cout * B]

        # ---- F: Linear(4->H) -> tanh -> Linear(H->3) on the MXU. --------------
        w1m = p_ref[R_W1:R_W1 + C1 * B, :][:, 0:HB]              # (C1*B, HB)
        b1r = p_ref[R_B1:R_B1 + 1, :][:, 0:HB]                   # (1, HB)
        w2m = p_ref[R_W2:R_W2 + HB, :][:, 0:NC2]                 # (HB, NC2)
        b2r = p_ref[R_B2:R_B2 + 1, :][:, 0:NC2]                  # (1, NC2)

        h = jnp.tanh(jnp.dot(x1, w1m, preferred_element_type=jnp.float32) + b1r)
        z = jnp.dot(h, w2m, preferred_element_type=jnp.float32) + b2r  # (T, NC2)

        # ---- stage 2: G2 chains (Cout replication already baked into w2m). ----
        y2 = _iir(_fir_drive(z, bt2_v), nat2_v, s2_ref)          # (T, NC2)

        # ---- y = G2(F(G1(u))) + Glin(u): fused residual, single bulk store. ---
        y = y_lin
        for c in range(CF):
            y = y + y2[:, c * Cout * B:(c + 1) * Cout * B]
        y_ref[...] = y                                           # (T, Cout*B)

    vmem = pl.BlockSpec(memory_space=pltpu.MemorySpace.VMEM)
    y_flat = pl.pallas_call(
        kernel,
        out_shape=jax.ShapeDtypeStruct((T, Cout * B), f32),
        in_specs=[vmem, vmem],
        out_specs=vmem,
        scratch_shapes=[pltpu.VMEM((T, NC1), f32),   # stage-1 chain outputs
                        pltpu.VMEM((T, NC2), f32)],  # stage-2 chain outputs
    )(u_chain, p)

    # (T, Cout*B) -> (B, T, Cout)
    return jnp.transpose(y_flat.reshape(T, Cout, B), (2, 0, 1))


# --------------------------- pure-JAX reference -------------------------------

def lfilter_ref(b_coeff, a_coeff, u):
    B, T, Cin = u.shape
    Cout, _, n_b = b_coeff.shape
    n_a = a_coeff.shape[-1]
    b_t = jnp.transpose(b_coeff, (2, 0, 1))
    a_t = jnp.transpose(a_coeff, (2, 0, 1))

    def step(carry, u_t):
        u_lags, y_lags = carry
        u_lags = jnp.concatenate([u_t[None], u_lags[:-1]], axis=0)
        fir = jnp.einsum('koi,kbi->boi', b_t, u_lags)
        ar = jnp.einsum('joi,jboi->boi', a_t, y_lags)
        y_oi = fir - ar
        y_lags = jnp.concatenate([y_oi[None], y_lags[:-1]], axis=0)
        return (u_lags, y_lags), jnp.sum(y_oi, axis=-1)

    init = (jnp.zeros((n_b, B, Cin), jnp.float32),
            jnp.zeros((n_a, B, Cout, Cin), jnp.float32))
    _, ys = lax.scan(step, init, jnp.transpose(u, (1, 0, 2)))
    return jnp.transpose(ys, (1, 0, 2))


def dynonet_forward_ref(x_in, params):
    g1, f, g2, glin = params
    x = lfilter_ref(g1[0], g1[1], x_in)
    w1, b1, w2, b2 = f
    x = jnp.tanh(x @ w1 + b1[0]) @ w2 + b2[0]
    return lfilter_ref(g2[0], g2[1], x) + lfilter_ref(glin[0], glin[1], x_in)


# ------------------------------ parameters ------------------------------------

def init_params(key, input_size, hidden_size, output_size, n_a, n_b):
    ks = jax.random.split(key, 10)

    def lti_p(kb, ka, cin, cout):
        # dynonet initializes transfer-function coefficients ~ N(0, 0.01^2)
        b = 0.01 * jax.random.normal(kb, (cout, cin, n_b), jnp.float32)
        a = 0.01 * jax.random.normal(ka, (cout, cin, n_a), jnp.float32)
        return b, a

    g1 = lti_p(ks[0], ks[1], input_size, 4)
    g2 = lti_p(ks[2], ks[3], 3, output_size)
    glin = lti_p(ks[4], ks[5], input_size, output_size)

    # MimoStaticNonLinearity(4, 3, n_hidden): Linear(4,H) -> tanh -> Linear(H,3)
    lim1 = 1.0 / jnp.sqrt(4.0)
    w1 = jax.random.uniform(ks[6], (4, hidden_size), jnp.float32, -lim1, lim1)
    b1 = jax.random.uniform(ks[7], (1, hidden_size), jnp.float32, -lim1, lim1)
    lim2 = 1.0 / jnp.sqrt(float(hidden_size))
    w2 = jax.random.uniform(ks[8], (hidden_size, 3), jnp.float32, -lim2, lim2)
    b2 = jax.random.uniform(ks[9], (1, 3), jnp.float32, -lim2, lim2)
    f = (w1, b1, w2, b2)
    return g1, f, g2, glin


# --------------------------------- main ----------------------------------------

if __name__ == "__main__":
    input_size, hidden_size, output_size = 2, 32, 2
    n_a, n_b = 2, 3
    B, T = 2, 16

    key = jax.random.PRNGKey(0)
    k_x, k_p = jax.random.split(key)
    x_in = jax.random.normal(k_x, (B, T, input_size), jnp.float32)
    params = init_params(k_p, input_size, hidden_size, output_size, n_a, n_b)

    fwd = jax.jit(dynonet_forward)
    y = jax.block_until_ready(fwd(x_in, params))

    y_ref = dynonet_forward_ref(x_in, params)
    assert y.shape == (B, T, output_size), y.shape
    assert bool(jnp.all(jnp.isfinite(y)))
    max_err = float(jnp.max(jnp.abs(y - y_ref)))
    assert bool(jnp.allclose(y, y_ref, rtol=1e-3, atol=1e-4)), max_err

    print("KERNEL_OK")
</pallas_src>

<mosaic_0001>
module attributes {stable_mosaic.version = 11 : i64} {
  func.func @kernel(%arg0: memref<16x24xf32, #tpu.memory_space<vmem>>, %arg1: memref<96x64xf32, #tpu.memory_space<vmem>>, %arg2: memref<16x4xf32, #tpu.memory_space<vmem>>, %arg3: memref<16x24xf32, #tpu.memory_space<vmem>>, %arg4: memref<16x12xf32, #tpu.memory_space<vmem>>) attributes {dimension_semantics = [], scalar_prefetch = 0 : i64, scratch_operands = 2 : i64, tpu.core_type = #tpu.core_type<tc>} {
    %c0 = arith.constant 0 : index
    %c0_0 = arith.constant 0 : index
    %0 = vector.load %arg0[%c0, %c0_0] : memref<16x24xf32, #tpu.memory_space<vmem>>, vector<16x24xf32>
    %c0_1 = arith.constant 0 : index
    %c0_2 = arith.constant 0 : index
    %1 = vector.load %arg1[%c0_1, %c0_2] : memref<96x64xf32, #tpu.memory_space<vmem>>, vector<5x64xf32>
    %2 = vector.extract_strided_slice %1 {offsets = [0, 0], sizes = [3, 24], strides = [1, 1]} : vector<5x64xf32> to vector<3x24xf32>
    %3 = vector.extract_strided_slice %1 {offsets = [0, 24], sizes = [3, 12], strides = [1, 1]} : vector<5x64xf32> to vector<3x12xf32>
    %4 = vector.extract_strided_slice %1 {offsets = [3, 0], sizes = [2, 24], strides = [1, 1]} : vector<5x64xf32> to vector<2x24xf32>
    %5 = vector.extract_strided_slice %1 {offsets = [3, 24], sizes = [2, 12], strides = [1, 1]} : vector<5x64xf32> to vector<2x12xf32>
    %6 = vector.extract_strided_slice %2 {offsets = [0, 0], sizes = [1, 24], strides = [1, 1]} : vector<3x24xf32> to vector<1x24xf32>
    %7 = vector.broadcast %6 : vector<1x24xf32> to vector<16x24xf32>
    %8 = arith.mulf %7, %0 : vector<16x24xf32>
    %cst = arith.constant 0.000000e+00 : f32
    %9 = vector.broadcast %cst : f32 to vector<2x24xf32>
    %10 = tpu.concatenate %9, %0 in 0 : vector<2x24xf32>, vector<16x24xf32> -> vector<18x24xf32>
    %11 = vector.extract_strided_slice %2 {offsets = [1, 0], sizes = [1, 24], strides = [1, 1]} : vector<3x24xf32> to vector<1x24xf32>
    %12 = vector.extract_strided_slice %10 {offsets = [1, 0], sizes = [16, 24], strides = [1, 1]} : vector<18x24xf32> to vector<16x24xf32>
    %13 = vector.broadcast %11 : vector<1x24xf32> to vector<16x24xf32>
    %14 = arith.mulf %13, %12 : vector<16x24xf32>
    %15 = arith.addf %8, %14 : vector<16x24xf32>
    %16 = vector.extract_strided_slice %2 {offsets = [2, 0], sizes = [1, 24], strides = [1, 1]} : vector<3x24xf32> to vector<1x24xf32>
    %17 = vector.extract_strided_slice %10 {offsets = [0, 0], sizes = [16, 24], strides = [1, 1]} : vector<18x24xf32> to vector<16x24xf32>
    %18 = vector.broadcast %16 : vector<1x24xf32> to vector<16x24xf32>
    %19 = arith.mulf %18, %17 : vector<16x24xf32>
    %20 = arith.addf %15, %19 : vector<16x24xf32>
    %21 = vector.extract_strided_slice %4 {offsets = [0, 0], sizes = [1, 24], strides = [1, 1]} : vector<2x24xf32> to vector<1x24xf32>
    %22 = vector.extract_strided_slice %4 {offsets = [1, 0], sizes = [1, 24], strides = [1, 1]} : vector<2x24xf32> to vector<1x24xf32>
    %cst_3 = arith.constant 0.000000e+00 : f32
    %23 = vector.broadcast %cst_3 : f32 to vector<1x24xf32>
    %cst_4 = arith.constant 0.000000e+00 : f32
    %24 = vector.broadcast %cst_4 : f32 to vector<1x24xf32>
    %25 = vector.extract_strided_slice %20 {offsets = [0, 0], sizes = [1, 24], strides = [1, 1]} : vector<16x24xf32> to vector<1x24xf32>
    %26 = arith.mulf %21, %23 : vector<1x24xf32>
    %27 = arith.addf %25, %26 : vector<1x24xf32>
    %28 = arith.mulf %22, %24 : vector<1x24xf32>
    %29 = arith.addf %27, %28 : vector<1x24xf32>
    %c0_5 = arith.constant 0 : index
    %c0_6 = arith.constant 0 : index
    %30 = vector.load %arg3[%c0_5, %c0_6] : memref<16x24xf32, #tpu.memory_space<vmem>>, vector<1x24xf32>
    tpu.vector_store %arg3[%c0_5, %c0_6], %29 {strides = array<i32>} : memref<16x24xf32, #tpu.memory_space<vmem>>, vector<1x24xf32>,
    %31 = vector.extract_strided_slice %20 {offsets = [1, 0], sizes = [1, 24], strides = [1, 1]} : vector<16x24xf32> to vector<1x24xf32>
    %32 = arith.mulf %21, %29 : vector<1x24xf32>
    %33 = arith.addf %31, %32 : vector<1x24xf32>
    %34 = arith.mulf %22, %23 : vector<1x24xf32>
    %35 = arith.addf %33, %34 : vector<1x24xf32>
    %c1 = arith.constant 1 : index
    %c0_7 = arith.constant 0 : index
    %36 = vector.load %arg3[%c1, %c0_7] : memref<16x24xf32, #tpu.memory_space<vmem>>, vector<1x24xf32>
    tpu.vector_store %arg3[%c1, %c0_7], %35 {strides = array<i32>} : memref<16x24xf32, #tpu.memory_space<vmem>>, vector<1x24xf32>,
    %37 = vector.extract_strided_slice %20 {offsets = [2, 0], sizes = [1, 24], strides = [1, 1]} : vector<16x24xf32> to vector<1x24xf32>
    %38 = arith.mulf %21, %35 : vector<1x24xf32>
    %39 = arith.addf %37, %38 : vector<1x24xf32>
    %40 = arith.mulf %22, %29 : vector<1x24xf32>
    %41 = arith.addf %39, %40 : vector<1x24xf32>
    %c2 = arith.constant 2 : index
    %c0_8 = arith.constant 0 : index
    %42 = vector.load %arg3[%c2, %c0_8] : memref<16x24xf32, #tpu.memory_space<vmem>>, vector<1x24xf32>
    tpu.vector_store %arg3[%c2, %c0_8], %41 {strides = array<i32>} : memref<16x24xf32, #tpu.memory_space<vmem>>, vector<1x24xf32>,
    %43 = vector.extract_strided_slice %20 {offsets = [3, 0], sizes = [1, 24], strides = [1, 1]} : vector<16x24xf32> to vector<1x24xf32>
    %44 = arith.mulf %21, %41 : vector<1x24xf32>
    %45 = arith.addf %43, %44 : vector<1x24xf32>
    %46 = arith.mulf %22, %35 : vector<1x24xf32>
    %47 = arith.addf %45, %46 : vector<1x24xf32>
    %c3 = arith.constant 3 : index
    %c0_9 = arith.constant 0 : index
    %48 = vector.load %arg3[%c3, %c0_9] : memref<16x24xf32, #tpu.memory_space<vmem>>, vector<1x24xf32>
    tpu.vector_store %arg3[%c3, %c0_9], %47 {strides = array<i32>} : memref<16x24xf32, #tpu.memory_space<vmem>>, vector<1x24xf32>,
    %49 = vector.extract_strided_slice %20 {offsets = [4, 0], sizes = [1, 24], strides = [1, 1]} : vector<16x24xf32> to vector<1x24xf32>
    %50 = arith.mulf %21, %47 : vector<1x24xf32>
    %51 = arith.addf %49, %50 : vector<1x24xf32>
    %52 = arith.mulf %22, %41 : vector<1x24xf32>
    %53 = arith.addf %51, %52 : vector<1x24xf32>
    %c4 = arith.constant 4 : index
    %c0_10 = arith.constant 0 : index
    %54 = vector.load %arg3[%c4, %c0_10] : memref<16x24xf32, #tpu.memory_space<vmem>>, vector<1x24xf32>
    tpu.vector_store %arg3[%c4, %c0_10], %53 {strides = array<i32>} : memref<16x24xf32, #tpu.memory_space<vmem>>, vector<1x24xf32>,
    %55 = vector.extract_strided_slice %20 {offsets = [5, 0], sizes = [1, 24], strides = [1, 1]} : vector<16x24xf32> to vector<1x24xf32>
    %56 = arith.mulf %21, %53 : vector<1x24xf32>
    %57 = arith.addf %55, %56 : vector<1x24xf32>
    %58 = arith.mulf %22, %47 : vector<1x24xf32>
    %59 = arith.addf %57, %58 : vector<1x24xf32>
    %c5 = arith.constant 5 : index
    %c0_11 = arith.constant 0 : index
    %60 = vector.load %arg3[%c5, %c0_11] : memref<16x24xf32, #tpu.memory_space<vmem>>, vector<1x24xf32>
    tpu.vector_store %arg3[%c5, %c0_11], %59 {strides = array<i32>} : memref<16x24xf32, #tpu.memory_space<vmem>>, vector<1x24xf32>,
    %61 = vector.extract_strided_slice %20 {offsets = [6, 0], sizes = [1, 24], strides = [1, 1]} : vector<16x24xf32> to vector<1x24xf32>
    %62 = arith.mulf %21, %59 : vector<1x24xf32>
    %63 = arith.addf %61, %62 : vector<1x24xf32>
    %64 = arith.mulf %22, %53 : vector<1x24xf32>
    %65 = arith.addf %63, %64 : vector<1x24xf32>
    %c6 = arith.constant 6 : index
    %c0_12 = arith.constant 0 : index
    %66 = vector.load %arg3[%c6, %c0_12] : memref<16x24xf32, #tpu.memory_space<vmem>>, vector<1x24xf32>
    tpu.vector_store %arg3[%c6, %c0_12], %65 {strides = array<i32>} : memref<16x24xf32, #tpu.memory_space<vmem>>, vector<1x24xf32>,
    %67 = vector.extract_strided_slice %20 {offsets = [7, 0], sizes = [1, 24], strides = [1, 1]} : vector<16x24xf32> to vector<1x24xf32>
    %68 = arith.mulf %21, %65 : vector<1x24xf32>
    %69 = arith.addf %67, %68 : vector<1x24xf32>
    %70 = arith.mulf %22, %59 : vector<1x24xf32>
    %71 = arith.addf %69, %70 : vector<1x24xf32>
    %c7 = arith.constant 7 : index
    %c0_13 = arith.constant 0 : index
    %72 = vector.load %arg3[%c7, %c0_13] : memref<16x24xf32, #tpu.memory_space<vmem>>, vector<1x24xf32>
    tpu.vector_store %arg3[%c7, %c0_13], %71 {strides = array<i32>} : memref<16x24xf32, #tpu.memory_space<vmem>>, vector<1x24xf32>,
    %73 = vector.extract_strided_slice %20 {offsets = [8, 0], sizes = [1, 24], strides = [1, 1]} : vector<16x24xf32> to vector<1x24xf32>
    %74 = arith.mulf %21, %71 : vector<1x24xf32>
    %75 = arith.addf %73, %74 : vector<1x24xf32>
    %76 = arith.mulf %22, %65 : vector<1x24xf32>
    %77 = arith.addf %75, %76 : vector<1x24xf32>
    %c8 = arith.constant 8 : index
    %c0_14 = arith.constant 0 : index
    %78 = vector.load %arg3[%c8, %c0_14] : memref<16x24xf32, #tpu.memory_space<vmem>>, vector<1x24xf32>
    tpu.vector_store %arg3[%c8, %c0_14], %77 {strides = array<i32>} : memref<16x24xf32, #tpu.memory_space<vmem>>, vector<1x24xf32>,
    %79 = vector.extract_strided_slice %20 {offsets = [9, 0], sizes = [1, 24], strides = [1, 1]} : vector<16x24xf32> to vector<1x24xf32>
    %80 = arith.mulf %21, %77 : vector<1x24xf32>
    %81 = arith.addf %79, %80 : vector<1x24xf32>
    %82 = arith.mulf %22, %71 : vector<1x24xf32>
    %83 = arith.addf %81, %82 : vector<1x24xf32>
    %c9 = arith.constant 9 : index
    %c0_15 = arith.constant 0 : index
    %84 = vector.load %arg3[%c9, %c0_15] : memref<16x24xf32, #tpu.memory_space<vmem>>, vector<1x24xf32>
    tpu.vector_store %arg3[%c9, %c0_15], %83 {strides = array<i32>} : memref<16x24xf32, #tpu.memory_space<vmem>>, vector<1x24xf32>,
    %85 = vector.extract_strided_slice %20 {offsets = [10, 0], sizes = [1, 24], strides = [1, 1]} : vector<16x24xf32> to vector<1x24xf32>
    %86 = arith.mulf %21, %83 : vector<1x24xf32>
    %87 = arith.addf %85, %86 : vector<1x24xf32>
    %88 = arith.mulf %22, %77 : vector<1x24xf32>
    %89 = arith.addf %87, %88 : vector<1x24xf32>
    %c10 = arith.constant 10 : index
    %c0_16 = arith.constant 0 : index
    %90 = vector.load %arg3[%c10, %c0_16] : memref<16x24xf32, #tpu.memory_space<vmem>>, vector<1x24xf32>
    tpu.vector_store %arg3[%c10, %c0_16], %89 {strides = array<i32>} : memref<16x24xf32, #tpu.memory_space<vmem>>, vector<1x24xf32>,
    %91 = vector.extract_strided_slice %20 {offsets = [11, 0], sizes = [1, 24], strides = [1, 1]} : vector<16x24xf32> to vector<1x24xf32>
    %92 = arith.mulf %21, %89 : vector<1x24xf32>
    %93 = arith.addf %91, %92 : vector<1x24xf32>
    %94 = arith.mulf %22, %83 : vector<1x24xf32>
    %95 = arith.addf %93, %94 : vector<1x24xf32>
    %c11 = arith.constant 11 : index
    %c0_17 = arith.constant 0 : index
    %96 = vector.load %arg3[%c11, %c0_17] : memref<16x24xf32, #tpu.memory_space<vmem>>, vector<1x24xf32>
    tpu.vector_store %arg3[%c11, %c0_17], %95 {strides = array<i32>} : memref<16x24xf32, #tpu.memory_space<vmem>>, vector<1x24xf32>,
    %97 = vector.extract_strided_slice %20 {offsets = [12, 0], sizes = [1, 24], strides = [1, 1]} : vector<16x24xf32> to vector<1x24xf32>
    %98 = arith.mulf %21, %95 : vector<1x24xf32>
    %99 = arith.addf %97, %98 : vector<1x24xf32>
    %100 = arith.mulf %22, %89 : vector<1x24xf32>
    %101 = arith.addf %99, %100 : vector<1x24xf32>
    %c12 = arith.constant 12 : index
    %c0_18 = arith.constant 0 : index
    %102 = vector.load %arg3[%c12, %c0_18] : memref<16x24xf32, #tpu.memory_space<vmem>>, vector<1x24xf32>
    tpu.vector_store %arg3[%c12, %c0_18], %101 {strides = array<i32>} : memref<16x24xf32, #tpu.memory_space<vmem>>, vector<1x24xf32>,
    %103 = vector.extract_strided_slice %20 {offsets = [13, 0], sizes = [1, 24], strides = [1, 1]} : vector<16x24xf32> to vector<1x24xf32>
    %104 = arith.mulf %21, %101 : vector<1x24xf32>
    %105 = arith.addf %103, %104 : vector<1x24xf32>
    %106 = arith.mulf %22, %95 : vector<1x24xf32>
    %107 = arith.addf %105, %106 : vector<1x24xf32>
    %c13 = arith.constant 13 : index
    %c0_19 = arith.constant 0 : index
    %108 = vector.load %arg3[%c13, %c0_19] : memref<16x24xf32, #tpu.memory_space<vmem>>, vector<1x24xf32>
    tpu.vector_store %arg3[%c13, %c0_19], %107 {strides = array<i32>} : memref<16x24xf32, #tpu.memory_space<vmem>>, vector<1x24xf32>,
    %109 = vector.extract_strided_slice %20 {offsets = [14, 0], sizes = [1, 24], strides = [1, 1]} : vector<16x24xf32> to vector<1x24xf32>
    %110 = arith.mulf %21, %107 : vector<1x24xf32>
    %111 = arith.addf %109, %110 : vector<1x24xf32>
    %112 = arith.mulf %22, %101 : vector<1x24xf32>
    %113 = arith.addf %111, %112 : vector<1x24xf32>
    %c14 = arith.constant 14 : index
    %c0_20 = arith.constant 0 : index
    %114 = vector.load %arg3[%c14, %c0_20] : memref<16x24xf32, #tpu.memory_space<vmem>>, vector<1x24xf32>
    tpu.vector_store %arg3[%c14, %c0_20], %113 {strides = array<i32>} : memref<16x24xf32, #tpu.memory_space<vmem>>, vector<1x24xf32>,
    %115 = vector.extract_strided_slice %20 {offsets = [15, 0], sizes = [1, 24], strides = [1, 1]} : vector<16x24xf32> to vector<1x24xf32>
    %116 = arith.mulf %21, %113 : vector<1x24xf32>
    %117 = arith.addf %115, %116 : vector<1x24xf32>
    %118 = arith.mulf %22, %107 : vector<1x24xf32>
    %119 = arith.addf %117, %118 : vector<1x24xf32>
    %c15 = arith.constant 15 : index
    %c0_21 = arith.constant 0 : index
    %120 = vector.load %arg3[%c15, %c0_21] : memref<16x24xf32, #tpu.memory_space<vmem>>, vector<1x24xf32>
    tpu.vector_store %arg3[%c15, %c0_21], %119 {strides = array<i32>} : memref<16x24xf32, #tpu.memory_space<vmem>>, vector<1x24xf32>,
    %c0_22 = arith.constant 0 : index
    %c0_23 = arith.constant 0 : index
    %121 = vector.load %arg3[%c0_22, %c0_23] : memref<16x24xf32, #tpu.memory_space<vmem>>, vector<16x24xf32>
    %122 = vector.extract_strided_slice %121 {offsets = [0, 0], sizes = [16, 8], strides = [1, 1]} : vector<16x24xf32> to vector<16x8xf32>
    %123 = vector.extract_strided_slice %121 {offsets = [0, 8], sizes = [16, 8], strides = [1, 1]} : vector<16x24xf32> to vector<16x8xf32>
    %124 = arith.addf %122, %123 : vector<16x8xf32>
    %125 = vector.extract_strided_slice %121 {offsets = [0, 16], sizes = [16, 4], strides = [1, 1]} : vector<16x24xf32> to vector<16x4xf32>
    %126 = vector.extract_strided_slice %121 {offsets = [0, 20], sizes = [16, 4], strides = [1, 1]} : vector<16x24xf32> to vector<16x4xf32>
    %127 = arith.addf %125, %126 : vector<16x4xf32>
    %c8_24 = arith.constant 8 : index
    %c0_25 = arith.constant 0 : index
    %128 = vector.load %arg1[%c8_24, %c0_25] : memref<96x64xf32, #tpu.memory_space<vmem>>, vector<8x64xf32>
    %c16 = arith.constant 16 : index
    %c0_26 = arith.constant 0 : index
    %129 = vector.load %arg1[%c16, %c0_26] : memref<96x64xf32, #tpu.memory_space<vmem>>, vector<1x64xf32>
    %c24 = arith.constant 24 : index
    %c0_27 = arith.constant 0 : index
    %130 = vector.load %arg1[%c24, %c0_27] : memref<96x64xf32, #tpu.memory_space<vmem>>, vector<64x64xf32>
    %131 = vector.extract_strided_slice %130 {offsets = [0, 0], sizes = [64, 12], strides = [1, 1]} : vector<64x64xf32> to vector<64x12xf32>
    %c88 = arith.constant 88 : index
    %c0_28 = arith.constant 0 : index
    %132 = vector.load %arg1[%c88, %c0_28] : memref<96x64xf32, #tpu.memory_space<vmem>>, vector<1x64xf32>
    %133 = vector.extract_strided_slice %132 {offsets = [0, 0], sizes = [1, 12], strides = [1, 1]} : vector<1x64xf32> to vector<1x12xf32>
    %cst_29 = arith.constant dense<0.000000e+00> : vector<16x64xf32>
    %134 = tpu.matmul %124, %128, %cst_29 {dimension_numbers = #tpu.dot_dimension_numbers<[1], [0], [0], [1], [0, 0, 1, 1], [], []>} : vector<16x8xf32>, vector<8x64xf32>, vector<16x64xf32> -> vector<16x64xf32>
    %135 = vector.broadcast %129 : vector<1x64xf32> to vector<16x64xf32>
    %136 = arith.addf %134, %135 : vector<16x64xf32>
    %137 = math.tanh %136 : vector<16x64xf32>
    %cst_30 = arith.constant dense<0.000000e+00> : vector<16x12xf32>
    %138 = tpu.matmul %137, %131, %cst_30 {dimension_numbers = #tpu.dot_dimension_numbers<[1], [0], [0], [1], [0, 0, 1, 1], [], []>} : vector<16x64xf32>, vector<64x12xf32>, vector<16x12xf32> -> vector<16x12xf32>
    %139 = vector.broadcast %133 : vector<1x12xf32> to vector<16x12xf32>
    %140 = arith.addf %138, %139 : vector<16x12xf32>
    %141 = vector.extract_strided_slice %3 {offsets = [0, 0], sizes = [1, 12], strides = [1, 1]} : vector<3x12xf32> to vector<1x12xf32>
    %142 = vector.broadcast %141 : vector<1x12xf32> to vector<16x12xf32>
    %143 = arith.mulf %142, %140 : vector<16x12xf32>
    %cst_31 = arith.constant 0.000000e+00 : f32
    %144 = vector.broadcast %cst_31 : f32 to vector<2x12xf32>
    %145 = tpu.concatenate %144, %140 in 0 : vector<2x12xf32>, vector<16x12xf32> -> vector<18x12xf32>
    %146 = vector.extract_strided_slice %3 {offsets = [1, 0], sizes = [1, 12], strides = [1, 1]} : vector<3x12xf32> to vector<1x12xf32>
    %147 = vector.extract_strided_slice %145 {offsets = [1, 0], sizes = [16, 12], strides = [1, 1]} : vector<18x12xf32> to vector<16x12xf32>
    %148 = vector.broadcast %146 : vector<1x12xf32> to vector<16x12xf32>
    %149 = arith.mulf %148, %147 : vector<16x12xf32>
    %150 = arith.addf %143, %149 : vector<16x12xf32>
    %151 = vector.extract_strided_slice %3 {offsets = [2, 0], sizes = [1, 12], strides = [1, 1]} : vector<3x12xf32> to vector<1x12xf32>
    %152 = vector.extract_strided_slice %145 {offsets = [0, 0], sizes = [16, 12], strides = [1, 1]} : vector<18x12xf32> to vector<16x12xf32>
    %153 = vector.broadcast %151 : vector<1x12xf32> to vector<16x12xf32>
    %154 = arith.mulf %153, %152 : vector<16x12xf32>
    %155 = arith.addf %150, %154 : vector<16x12xf32>
    %156 = vector.extract_strided_slice %5 {offsets = [0, 0], sizes = [1, 12], strides = [1, 1]} : vector<2x12xf32> to vector<1x12xf32>
    %157 = vector.extract_strided_slice %5 {offsets = [1, 0], sizes = [1, 12], strides = [1, 1]} : vector<2x12xf32> to vector<1x12xf32>
    %cst_32 = arith.constant 0.000000e+00 : f32
    %158 = vector.broadcast %cst_32 : f32 to vector<1x12xf32>
    %cst_33 = arith.constant 0.000000e+00 : f32
    %159 = vector.broadcast %cst_33 : f32 to vector<1x12xf32>
    %160 = vector.extract_strided_slice %155 {offsets = [0, 0], sizes = [1, 12], strides = [1, 1]} : vector<16x12xf32> to vector<1x12xf32>
    %161 = arith.mulf %156, %158 : vector<1x12xf32>
    %162 = arith.addf %160, %161 : vector<1x12xf32>
    %163 = arith.mulf %157, %159 : vector<1x12xf32>
    %164 = arith.addf %162, %163 : vector<1x12xf32>
    %c0_34 = arith.constant 0 : index
    %c0_35 = arith.constant 0 : index
    %165 = vector.load %arg4[%c0_34, %c0_35] : memref<16x12xf32, #tpu.memory_space<vmem>>, vector<1x12xf32>
    tpu.vector_store %arg4[%c0_34, %c0_35], %164 {strides = array<i32>} : memref<16x12xf32, #tpu.memory_space<vmem>>, vector<1x12xf32>,
    %166 = vector.extract_strided_slice %155 {offsets = [1, 0], sizes = [1, 12], strides = [1, 1]} : vector<16x12xf32> to vector<1x12xf32>
    %167 = arith.mulf %156, %164 : vector<1x12xf32>
    %168 = arith.addf %166, %167 : vector<1x12xf32>
    %169 = arith.mulf %157, %158 : vector<1x12xf32>
    %170 = arith.addf %168, %169 : vector<1x12xf32>
    %c1_36 = arith.constant 1 : index
    %c0_37 = arith.constant 0 : index
    %171 = vector.load %arg4[%c1_36, %c0_37] : memref<16x12xf32, #tpu.memory_space<vmem>>, vector<1x12xf32>
    tpu.vector_store %arg4[%c1_36, %c0_37], %170 {strides = array<i32>} : memref<16x12xf32, #tpu.memory_space<vmem>>, vector<1x12xf32>,
    %172 = vector.extract_strided_slice %155 {offsets = [2, 0], sizes = [1, 12], strides = [1, 1]} : vector<16x12xf32> to vector<1x12xf32>
    %173 = arith.mulf %156, %170 : vector<1x12xf32>
    %174 = arith.addf %172, %173 : vector<1x12xf32>
    %175 = arith.mulf %157, %164 : vector<1x12xf32>
    %176 = arith.addf %174, %175 : vector<1x12xf32>
    %c2_38 = arith.constant 2 : index
    %c0_39 = arith.constant 0 : index
    %177 = vector.load %arg4[%c2_38, %c0_39] : memref<16x12xf32, #tpu.memory_space<vmem>>, vector<1x12xf32>
    tpu.vector_store %arg4[%c2_38, %c0_39], %176 {strides = array<i32>} : memref<16x12xf32, #tpu.memory_space<vmem>>, vector<1x12xf32>,
    %178 = vector.extract_strided_slice %155 {offsets = [3, 0], sizes = [1, 12], strides = [1, 1]} : vector<16x12xf32> to vector<1x12xf32>
    %179 = arith.mulf %156, %176 : vector<1x12xf32>
    %180 = arith.addf %178, %179 : vector<1x12xf32>
    %181 = arith.mulf %157, %170 : vector<1x12xf32>
    %182 = arith.addf %180, %181 : vector<1x12xf32>
    %c3_40 = arith.constant 3 : index
    %c0_41 = arith.constant 0 : index
    %183 = vector.load %arg4[%c3_40, %c0_41] : memref<16x12xf32, #tpu.memory_space<vmem>>, vector<1x12xf32>
    tpu.vector_store %arg4[%c3_40, %c0_41], %182 {strides = array<i32>} : memref<16x12xf32, #tpu.memory_space<vmem>>, vector<1x12xf32>,
    %184 = vector.extract_strided_slice %155 {offsets = [4, 0], sizes = [1, 12], strides = [1, 1]} : vector<16x12xf32> to vector<1x12xf32>
    %185 = arith.mulf %156, %182 : vector<1x12xf32>
    %186 = arith.addf %184, %185 : vector<1x12xf32>
    %187 = arith.mulf %157, %176 : vector<1x12xf32>
    %188 = arith.addf %186, %187 : vector<1x12xf32>
    %c4_42 = arith.constant 4 : index
    %c0_43 = arith.constant 0 : index
    %189 = vector.load %arg4[%c4_42, %c0_43] : memref<16x12xf32, #tpu.memory_space<vmem>>, vector<1x12xf32>
    tpu.vector_store %arg4[%c4_42, %c0_43], %188 {strides = array<i32>} : memref<16x12xf32, #tpu.memory_space<vmem>>, vector<1x12xf32>,
    %190 = vector.extract_strided_slice %155 {offsets = [5, 0], sizes = [1, 12], strides = [1, 1]} : vector<16x12xf32> to vector<1x12xf32>
    %191 = arith.mulf %156, %188 : vector<1x12xf32>
    %192 = arith.addf %190, %191 : vector<1x12xf32>
    %193 = arith.mulf %157, %182 : vector<1x12xf32>
    %194 = arith.addf %192, %193 : vector<1x12xf32>
    %c5_44 = arith.constant 5 : index
    %c0_45 = arith.constant 0 : index
    %195 = vector.load %arg4[%c5_44, %c0_45] : memref<16x12xf32, #tpu.memory_space<vmem>>, vector<1x12xf32>
    tpu.vector_store %arg4[%c5_44, %c0_45], %194 {strides = array<i32>} : memref<16x12xf32, #tpu.memory_space<vmem>>, vector<1x12xf32>,
    %196 = vector.extract_strided_slice %155 {offsets = [6, 0], sizes = [1, 12], strides = [1, 1]} : vector<16x12xf32> to vector<1x12xf32>
    %197 = arith.mulf %156, %194 : vector<1x12xf32>
    %198 = arith.addf %196, %197 : vector<1x12xf32>
    %199 = arith.mulf %157, %188 : vector<1x12xf32>
    %200 = arith.addf %198, %199 : vector<1x12xf32>
    %c6_46 = arith.constant 6 : index
    %c0_47 = arith.constant 0 : index
    %201 = vector.load %arg4[%c6_46, %c0_47] : memref<16x12xf32, #tpu.memory_space<vmem>>, vector<1x12xf32>
    tpu.vector_store %arg4[%c6_46, %c0_47], %200 {strides = array<i32>} : memref<16x12xf32, #tpu.memory_space<vmem>>, vector<1x12xf32>,
    %202 = vector.extract_strided_slice %155 {offsets = [7, 0], sizes = [1, 12], strides = [1, 1]} : vector<16x12xf32> to vector<1x12xf32>
    %203 = arith.mulf %156, %200 : vector<1x12xf32>
    %204 = arith.addf %202, %203 : vector<1x12xf32>
    %205 = arith.mulf %157, %194 : vector<1x12xf32>
    %206 = arith.addf %204, %205 : vector<1x12xf32>
    %c7_48 = arith.constant 7 : index
    %c0_49 = arith.constant 0 : index
    %207 = vector.load %arg4[%c7_48, %c0_49] : memref<16x12xf32, #tpu.memory_space<vmem>>, vector<1x12xf32>
    tpu.vector_store %arg4[%c7_48, %c0_49], %206 {strides = array<i32>} : memref<16x12xf32, #tpu.memory_space<vmem>>, vector<1x12xf32>,
    %208 = vector.extract_strided_slice %155 {offsets = [8, 0], sizes = [1, 12], strides = [1, 1]} : vector<16x12xf32> to vector<1x12xf32>
    %209 = arith.mulf %156, %206 : vector<1x12xf32>
    %210 = arith.addf %208, %209 : vector<1x12xf32>
    %211 = arith.mulf %157, %200 : vector<1x12xf32>
    %212 = arith.addf %210, %211 : vector<1x12xf32>
    %c8_50 = arith.constant 8 : index
    %c0_51 = arith.constant 0 : index
    %213 = vector.load %arg4[%c8_50, %c0_51] : memref<16x12xf32, #tpu.memory_space<vmem>>, vector<1x12xf32>
    tpu.vector_store %arg4[%c8_50, %c0_51], %212 {strides = array<i32>} : memref<16x12xf32, #tpu.memory_space<vmem>>, vector<1x12xf32>,
    %214 = vector.extract_strided_slice %155 {offsets = [9, 0], sizes = [1, 12], strides = [1, 1]} : vector<16x12xf32> to vector<1x12xf32>
    %215 = arith.mulf %156, %212 : vector<1x12xf32>
    %216 = arith.addf %214, %215 : vector<1x12xf32>
    %217 = arith.mulf %157, %206 : vector<1x12xf32>
    %218 = arith.addf %216, %217 : vector<1x12xf32>
    %c9_52 = arith.constant 9 : index
    %c0_53 = arith.constant 0 : index
    %219 = vector.load %arg4[%c9_52, %c0_53] : memref<16x12xf32, #tpu.memory_space<vmem>>, vector<1x12xf32>
    tpu.vector_store %arg4[%c9_52, %c0_53], %218 {strides = array<i32>} : memref<16x12xf32, #tpu.memory_space<vmem>>, vector<1x12xf32>,
    %220 = vector.extract_strided_slice %155 {offsets = [10, 0], sizes = [1, 12], strides = [1, 1]} : vector<16x12xf32> to vector<1x12xf32>
    %221 = arith.mulf %156, %218 : vector<1x12xf32>
    %222 = arith.addf %220, %221 : vector<1x12xf32>
    %223 = arith.mulf %157, %212 : vector<1x12xf32>
    %224 = arith.addf %222, %223 : vector<1x12xf32>
    %c10_54 = arith.constant 10 : index
    %c0_55 = arith.constant 0 : index
    %225 = vector.load %arg4[%c10_54, %c0_55] : memref<16x12xf32, #tpu.memory_space<vmem>>, vector<1x12xf32>
    tpu.vector_store %arg4[%c10_54, %c0_55], %224 {strides = array<i32>} : memref<16x12xf32, #tpu.memory_space<vmem>>, vector<1x12xf32>,
    %226 = vector.extract_strided_slice %155 {offsets = [11, 0], sizes = [1, 12], strides = [1, 1]} : vector<16x12xf32> to vector<1x12xf32>
    %227 = arith.mulf %156, %224 : vector<1x12xf32>
    %228 = arith.addf %226, %227 : vector<1x12xf32>
    %229 = arith.mulf %157, %218 : vector<1x12xf32>
    %230 = arith.addf %228, %229 : vector<1x12xf32>
    %c11_56 = arith.constant 11 : index
    %c0_57 = arith.constant 0 : index
    %231 = vector.load %arg4[%c11_56, %c0_57] : memref<16x12xf32, #tpu.memory_space<vmem>>, vector<1x12xf32>
    tpu.vector_store %arg4[%c11_56, %c0_57], %230 {strides = array<i32>} : memref<16x12xf32, #tpu.memory_space<vmem>>, vector<1x12xf32>,
    %232 = vector.extract_strided_slice %155 {offsets = [12, 0], sizes = [1, 12], strides = [1, 1]} : vector<16x12xf32> to vector<1x12xf32>
    %233 = arith.mulf %156, %230 : vector<1x12xf32>
    %234 = arith.addf %232, %233 : vector<1x12xf32>
    %235 = arith.mulf %157, %224 : vector<1x12xf32>
    %236 = arith.addf %234, %235 : vector<1x12xf32>
    %c12_58 = arith.constant 12 : index
    %c0_59 = arith.constant 0 : index
    %237 = vector.load %arg4[%c12_58, %c0_59] : memref<16x12xf32, #tpu.memory_space<vmem>>, vector<1x12xf32>
    tpu.vector_store %arg4[%c12_58, %c0_59], %236 {strides = array<i32>} : memref<16x12xf32, #tpu.memory_space<vmem>>, vector<1x12xf32>,
    %238 = vector.extract_strided_slice %155 {offsets = [13, 0], sizes = [1, 12], strides = [1, 1]} : vector<16x12xf32> to vector<1x12xf32>
    %239 = arith.mulf %156, %236 : vector<1x12xf32>
    %240 = arith.addf %238, %239 : vector<1x12xf32>
    %241 = arith.mulf %157, %230 : vector<1x12xf32>
    %242 = arith.addf %240, %241 : vector<1x12xf32>
    %c13_60 = arith.constant 13 : index
    %c0_61 = arith.constant 0 : index
    %243 = vector.load %arg4[%c13_60, %c0_61] : memref<16x12xf32, #tpu.memory_space<vmem>>, vector<1x12xf32>
    tpu.vector_store %arg4[%c13_60, %c0_61], %242 {strides = array<i32>} : memref<16x12xf32, #tpu.memory_space<vmem>>, vector<1x12xf32>,
    %244 = vector.extract_strided_slice %155 {offsets = [14, 0], sizes = [1, 12], strides = [1, 1]} : vector<16x12xf32> to vector<1x12xf32>
    %245 = arith.mulf %156, %242 : vector<1x12xf32>
    %246 = arith.addf %244, %245 : vector<1x12xf32>
    %247 = arith.mulf %157, %236 : vector<1x12xf32>
    %248 = arith.addf %246, %247 : vector<1x12xf32>
    %c14_62 = arith.constant 14 : index
    %c0_63 = arith.constant 0 : index
    %249 = vector.load %arg4[%c14_62, %c0_63] : memref<16x12xf32, #tpu.memory_space<vmem>>, vector<1x12xf32>
    tpu.vector_store %arg4[%c14_62, %c0_63], %248 {strides = array<i32>} : memref<16x12xf32, #tpu.memory_space<vmem>>, vector<1x12xf32>,
    %250 = vector.extract_strided_slice %155 {offsets = [15, 0], sizes = [1, 12], strides = [1, 1]} : vector<16x12xf32> to vector<1x12xf32>
    %251 = arith.mulf %156, %248 : vector<1x12xf32>
    %252 = arith.addf %250, %251 : vector<1x12xf32>
    %253 = arith.mulf %157, %242 : vector<1x12xf32>
    %254 = arith.addf %252, %253 : vector<1x12xf32>
    %c15_64 = arith.constant 15 : index
    %c0_65 = arith.constant 0 : index
    %255 = vector.load %arg4[%c15_64, %c0_65] : memref<16x12xf32, #tpu.memory_space<vmem>>, vector<1x12xf32>
    tpu.vector_store %arg4[%c15_64, %c0_65], %254 {strides = array<i32>} : memref<16x12xf32, #tpu.memory_space<vmem>>, vector<1x12xf32>,
    %c0_66 = arith.constant 0 : index
    %c0_67 = arith.constant 0 : index
    %256 = vector.load %arg4[%c0_66, %c0_67] : memref<16x12xf32, #tpu.memory_space<vmem>>, vector<16x12xf32>
    %257 = vector.extract_strided_slice %256 {offsets = [0, 0], sizes = [16, 4], strides = [1, 1]} : vector<16x12xf32> to vector<16x4xf32>
    %258 = arith.addf %127, %257 : vector<16x4xf32>
    %259 = vector.extract_strided_slice %256 {offsets = [0, 4], sizes = [16, 4], strides = [1, 1]} : vector<16x12xf32> to vector<16x4xf32>
    %260 = arith.addf %258, %259 : vector<16x4xf32>
    %261 = vector.extract_strided_slice %256 {offsets = [0, 8], sizes = [16, 4], strides = [1, 1]} : vector<16x12xf32> to vector<16x4xf32>
    %262 = arith.addf %260, %261 : vector<16x4xf32>
    %c0_68 = arith.constant 0 : index
    %c0_69 = arith.constant 0 : index
    %263 = vector.load %arg2[%c0_68, %c0_69] : memref<16x4xf32, #tpu.memory_space<vmem>>, vector<16x4xf32>
    tpu.vector_store %arg2[%c0_68, %c0_69], %262 {strides = array<i32>} : memref<16x4xf32, #tpu.memory_space<vmem>>, vector<16x4xf32>,
    return
  }
}

</mosaic_0001>

<llo_original>
// kernel: dynonet_forward.1
$region0: #{dynonet_forward.1}
  #allocation0 [shape = 'u32[]', space=smem, size = 0x4, offset = 0x4, fixed_abs, tag = 'smem constant byte address 0x4 - core index']
  #allocation1 [shape = 'u32[144,128]{1,0:T(1,128)}', space=vmem, size = 0x12000, scoped, tag = 'internal scratch']
  #allocation2 [shape = 'f32[16,24]{1,0:T(8,128)}', space=vmem, size = 0x2000, scoped, tag = 'scratch operand']
  #allocation3 [shape = 'f32[16,12]{1,0:T(8,128)}', space=vmem, size = 0x2000, scoped, tag = 'scratch operand']
  %s0 = inlined_call_operand.vmem [shape: f32[16,24], index: 0, kind: input, shape index: {}]
  %s1 = inlined_call_operand.vmem [shape: f32[96,64], index: 1, kind: input, shape index: {}]
  %s2 = inlined_call_operand.vmem [shape: f32[16,4], index: 2, kind: output, shape index: {}]
  %s3 = sld [smem:[#allocation0]]
  $region18: #{dynonet_forward.1} parent=0
    _
  %s5 = ssub.s32 1, %s3
  %s6 = scalar_select 0, %s5, %s3
  // Predicated region
  $region2: #{dynonet_forward.1} parent=0 // pred_check
    _
  $region3: #{dynonet_forward.1} parent=0 // pred_check_branch
    %8 = sbr.rel (0) target = $region5
  $region4: #{dynonet_forward.1} parent=0 // pred_region
    _
  $region5: #{dynonet_forward.1} parent=0 // pred_fallthru
    _
  // Predicated region
  $region6: #{dynonet_forward.1} parent=0 // pred_check
    _
  $region7: #{dynonet_forward.1} parent=0 // pred_check_branch
    %10 = sbr.rel (0) target = $region9
  $region8: #{dynonet_forward.1} parent=0 // pred_region
    _
  $region9: #{dynonet_forward.1} parent=0 // pred_fallthru
    _
  %v11 = vld [vmem:[%s0] sm:$0xff]
  %v12 = vld [vmem:[%s0 + $0x8] sm:$0xff]
  %v13 = vld [vmem:[%s1] sm:$0x1f]
  %v14 = vlaneseq
  %v15 = vshrl.u32 %v14, 7
  %v16 = vsub.s32 0, %v15
  %v17 = vrot.slane %v13, %v16
  %v18 = vmul.f32 %v17, %v11
  %v19 = vmul.f32 %v17, %v12
  %vm22 = vcmask 1041408
  %v23 = vrot.slane %v11, 6
  %v24 = vrot.slane %v12, 6
  %v25 = vsel %vm22, %v23, %v24
  %v29 = vsel %vm22, 0.0, %v23
  %v30 = vlaneseq
  %v31 = vshrl.u32 %v30, 7
  %v32 = vsub.s32 1, %v31
  %v33 = vrot.slane %v13, %v32
  %v34 = vmul.f32 %v33, %v29
  %v35 = vmul.f32 %v33, %v25
  %v36 = vmul.f32 %v33, %v24
  %vm40 = vcmask 1046528
  %v41 = vrot.slane %v34, 1
  %v42 = vrot.slane %v35, 1
  %v43 = vsel %vm40, %v41, %v42
  %v44 = vrot.slane %v36, 1
  %v45 = vsel %vm40, %v42, %v44
  %v48 = vadd.f32 %v18, %v43
  %v49 = vadd.f32 %v19, %v45
  %v50 = vlaneseq
  %v51 = vshrl.u32 %v50, 7
  %v52 = vsub.s32 2, %v51
  %v53 = vrot.slane %v13, %v52
  %v54 = vmul.f32 %v53, %v29
  %v55 = vmul.f32 %v53, %v25
  %v56 = vadd.f32 %v48, %v54
  %v57 = vadd.f32 %v49, %v55
  %v58 = vmul.f32 %v13, 0.0
  %v60 = vrot.slane %v58, 3
  %v62 = vadd.f32 %v56, %v60
  %v63 = vrot.slane %v58, 4
  %v65 = vadd.f32 %v62, %v63
  %vm66 = vcmask 188416
  %67 = vst.msk [vmem:[#allocation2] sm:$0x1] %vm66, %v65
  %v69 = vrot.slane %v65, 5
  %v71 = vmul.f32 %v13, %v69
  %v73 = vrot.slane %v71, 2
  %v75 = vadd.f32 %v56, %v73
  %v76 = vadd.f32 %v75, %v60
  %vm77 = vcmask 189441
  %78 = vst.msk [vmem:[#allocation2] sm:$0x2] %vm77, %v76
  %v80 = vrot.slane %v76, 6
  %v82 = vmul.f32 %v13, %v80
  %v84 = vrot.slane %v82, 1
  %v86 = vadd.f32 %v56, %v84
  %v87 = vrot.slane %v65, 4
  %v89 = vmul.f32 %v13, %v87
  %v91 = vrot.slane %v89, 2
  %v93 = vadd.f32 %v86, %v91
  %vm94 = vcmask 190466
  %95 = vst.msk [vmem:[#allocation2] sm:$0x4] %vm94, %v93
  %v97 = vrot.slane %v93, 7
  %v99 = vmul.f32 %v13, %v97
  %v100 = vadd.f32 %v56, %v99
  %v101 = vrot.slane %v76, 5
  %v103 = vmul.f32 %v13, %v101
  %v105 = vrot.slane %v103, 1
  %v107 = vadd.f32 %v100, %v105
  %vm108 = vcmask 191491
  %109 = vst.msk [vmem:[#allocation2] sm:$0x8] %vm108, %v107
  %v110 = vmul.f32 %v13, %v107
  %v112 = vrot.slane %v110, 7
  %v114 = vadd.f32 %v56, %v112
  %v115 = vrot.slane %v93, 6
  %v117 = vmul.f32 %v13, %v115
  %v118 = vadd.f32 %v114, %v117
  %vm119 = vcmask 192516
  %120 = vst.msk [vmem:[#allocation2] sm:$0x10] %vm119, %v118
  %v122 = vrot.slane %v118, 1
  %v124 = vmul.f32 %v13, %v122
  %v126 = vrot.slane %v124, 6
  %v128 = vadd.f32 %v56, %v126
  %v130 = vrot.slane %v107, 7
  %v132 = vmul.f32 %v13, %v130
  %v134 = vrot.slane %v132, 7
  %v136 = vadd.f32 %v128, %v134
  %vm137 = vcmask 193541
  %138 = vst.msk [vmem:[#allocation2] sm:$0x20] %vm137, %v136
  %v140 = vrot.slane %v136, 2
  %v142 = vmul.f32 %v13, %v140
  %v144 = vrot.slane %v142, 5
  %v146 = vadd.f32 %v56, %v144
  %v147 = vmul.f32 %v13, %v118
  %v149 = vrot.slane %v147, 6
  %v151 = vadd.f32 %v146, %v149
  %vm152 = vcmask 194566
  %153 = vst.msk [vmem:[#allocation2] sm:$0x40] %vm152, %v151
  %v155 = vrot.slane %v151, 3
  %v157 = vmul.f32 %v13, %v155
  %v159 = vrot.slane %v157, 4
  %v161 = vadd.f32 %v56, %v159
  %v162 = vrot.slane %v136, 1
  %v164 = vmul.f32 %v13, %v162
  %v166 = vrot.slane %v164, 5
  %v168 = vadd.f32 %v161, %v166
  %vm169 = vcmask 195591
  %170 = vst.msk [vmem:[#allocation2] sm:$0x80] %vm169, %v168
  %v172 = vrot.slane %v168, 4
  %v174 = vmul.f32 %v13, %v172
  %v176 = vrot.slane %v174, 3
  %v178 = vadd.f32 %v57, %v176
  %v179 = vrot.slane %v151, 2
  %v181 = vmul.f32 %v13, %v179
  %v183 = vrot.slane %v181, 4
  %v185 = vadd.f32 %v178, %v183
  %186 = vst.msk [vmem:[#allocation2 + $0x8] sm:$0x1] %vm66, %v185
  %v188 = vrot.slane %v185, 5
  %v190 = vmul.f32 %v13, %v188
  %v192 = vrot.slane %v190, 2
  %v194 = vadd.f32 %v57, %v192
  %v195 = vrot.slane %v168, 3
  %v197 = vmul.f32 %v13, %v195
  %v199 = vrot.slane %v197, 3
  %v201 = vadd.f32 %v194, %v199
  %202 = vst.msk [vmem:[#allocation2 + $0x8] sm:$0x2] %vm77, %v201
  %v204 = vrot.slane %v201, 6
  %v206 = vmul.f32 %v13, %v204
  %v208 = vrot.slane %v206, 1
  %v210 = vadd.f32 %v57, %v208
  %v211 = vrot.slane %v185, 4
  %v213 = vmul.f32 %v13, %v211
  %v215 = vrot.slane %v213, 2
  %v217 = vadd.f32 %v210, %v215
  %218 = vst.msk [vmem:[#allocation2 + $0x8] sm:$0x4] %vm94, %v217
  %v220 = vrot.slane %v217, 7
  %v222 = vmul.f32 %v13, %v220
  %v223 = vadd.f32 %v57, %v222
  %v224 = vrot.slane %v201, 5
  %v226 = vmul.f32 %v13, %v224
  %v228 = vrot.slane %v226, 1
  %v230 = vadd.f32 %v223, %v228
  %231 = vst.msk [vmem:[#allocation2 + $0x8] sm:$0x8] %vm108, %v230
  %v232 = vmul.f32 %v13, %v230
  %v234 = vrot.slane %v232, 7
  %v236 = vadd.f32 %v57, %v234
  %v237 = vrot.slane %v217, 6
  %v239 = vmul.f32 %v13, %v237
  %v240 = vadd.f32 %v236, %v239
  %241 = vst.msk [vmem:[#allocation2 + $0x8] sm:$0x10] %vm119, %v240
  %v243 = vrot.slane %v240, 1
  %v245 = vmul.f32 %v13, %v243
  %v247 = vrot.slane %v245, 6
  %v249 = vadd.f32 %v57, %v247
  %v251 = vrot.slane %v230, 7
  %v253 = vmul.f32 %v13, %v251
  %v255 = vrot.slane %v253, 7
  %v257 = vadd.f32 %v249, %v255
  %258 = vst.msk [vmem:[#allocation2 + $0x8] sm:$0x20] %vm137, %v257
  %v260 = vrot.slane %v257, 2
  %v262 = vmul.f32 %v13, %v260
  %v264 = vrot.slane %v262, 5
  %v266 = vadd.f32 %v57, %v264
  %v267 = vmul.f32 %v13, %v240
  %v269 = vrot.slane %v267, 6
  %v271 = vadd.f32 %v266, %v269
  %272 = vst.msk [vmem:[#allocation2 + $0x8] sm:$0x40] %vm152, %v271
  %v274 = vrot.slane %v271, 3
  %v276 = vmul.f32 %v13, %v274
  %v278 = vrot.slane %v276, 4
  %v280 = vadd.f32 %v57, %v278
  %v281 = vrot.slane %v257, 1
  %v283 = vmul.f32 %v13, %v281
  %v285 = vrot.slane %v283, 5
  %v287 = vadd.f32 %v280, %v285
  %288 = vst.msk [vmem:[#allocation2 + $0x8] sm:$0x80] %vm169, %v287
  %v289 = vld [vmem:[#allocation2] sm:$0xff]
  %v290 = vld [vmem:[#allocation2 + $0x8] sm:$0xff]
  %293 = vrot.lane.b32.xlu0 %v289, 120
  %v294 = vpop.permute.xlu0 %293
  %295 = vrot.lane.b32.xlu0 %v290, 120
  %v296 = vpop.permute.xlu0 %295
  %v299 = vadd.f32 %v289, %v294
  %v300 = vadd.f32 %v290, %v296
  %301 = vrot.lane.b32.xlu0 %v289, 124
  %v302 = vpop.permute.xlu0 %301
  %303 = vrot.lane.b32.xlu0 %v290, 124
  %v304 = vpop.permute.xlu0 %303
  %v307 = vadd.f32 %v289, %v302
  %v308 = vadd.f32 %v290, %v304
  %v309 = vld [vmem:[%s1 + $0x8] sm:$0xff]
  %v310 = vld [vmem:[%s1 + $0x10] sm:$0x1]
  %v311 = vld [vmem:[%s1 + $0x18] sm:$0xff]
  %v312 = vld [vmem:[%s1 + $0x20] sm:$0xff]
  %v313 = vld [vmem:[%s1 + $0x28] sm:$0xff]
  %v314 = vld [vmem:[%s1 + $0x30] sm:$0xff]
  %v315 = vld [vmem:[%s1 + $0x38] sm:$0xff]
  %v316 = vld [vmem:[%s1 + $0x40] sm:$0xff]
  %v317 = vld [vmem:[%s1 + $0x48] sm:$0xff]
  %v318 = vld [vmem:[%s1 + $0x50] sm:$0xff]
  %v319 = vld [vmem:[%s1 + $0x58] sm:$0x1]
  %v320 = vlaneseq
  %v321 = vshrl.u32 %v320, 7
  %v322 = vsub.s32 0, %v321
  %v323 = vrot.slane %v310, %v322
  %vm324 = vcmask 64512
  %v326 = vsel %vm324, %v299, 0
  %v329 = vsel %vm324, %v300, 0
  %331 = vmatprep.subr.mxu0 0.0
  %332 = vmatpush1.msra.mxu0 %v309
  %333 = vmatprep.subr.mxu0 0.0
  %334 = vmatpush1.msra.mxu0 0.0
  %335 = vmatprep.subr.mxu0 0.0
  %336 = vmatpush1.msra.mxu0 0.0
  %337 = vmatprep.subr.mxu0 0.0
  %338 = vmatpush1.msra.mxu0 0.0
  %339 = vmatprep.subr.mxu0 0.0
  %340 = vmatpush1.msra.mxu0 0.0
  %341 = vmatprep.subr.mxu0 0.0
  %342 = vmatpush1.msra.mxu0 0.0
  %343 = vmatprep.subr.mxu0 0.0
  %344 = vmatpush1.msra.mxu0 0.0
  %345 = vmatprep.subr.mxu0 0.0
  %346 = vmatpush1.msra.mxu0 0.0
  %347 = vmatprep.subr.mxu0 0.0
  %348 = vmatpush1.msra.mxu0 0.0
  %349 = vmatprep.subr.mxu0 0.0
  %350 = vmatpush1.msra.mxu0 0.0
  %351 = vmatprep.subr.mxu0 0.0
  %352 = vmatpush1.msra.mxu0 0.0
  %353 = vmatprep.subr.mxu0 0.0
  %354 = vmatpush1.msra.mxu0 0.0
  %355 = vmatprep.subr.mxu0 0.0
  %356 = vmatpush1.msra.mxu0 0.0
  %357 = vmatprep.subr.mxu0 0.0
  %358 = vmatpush1.msra.mxu0 0.0
  %359 = vmatprep.subr.mxu0 0.0
  %360 = vmatpush1.msra.mxu0 0.0
  %361 = vmatprep.subr.mxu0 0.0
  %362 = vmatpush1.msra.mxu0 0.0
  %363 = vmatprep.subr.mxu0 0.0
  %364 = vmatpush1.msra.mxu0 0.0
  %365 = vmatprep.subr.mxu0 0.0
  %366 = vmatpush1.msra.mxu0 0.0
  %367 = vmatprep.subr.mxu0 0.0
  %368 = vmatpush1.msra.mxu0 0.0
  %369 = vmatprep.subr.mxu0 0.0
  %370 = vmatpush1.msra.mxu0 0.0
  %371 = vmatprep.subr.mxu0 0.0
  %372 = vmatpush1.msra.mxu0 0.0
  %373 = vmatprep.subr.mxu0 0.0
  %374 = vmatpush1.msra.mxu0 0.0
  %375 = vmatprep.subr.mxu0 0.0
  %376 = vmatpush1.msra.mxu0 0.0
  %377 = vmatprep.subr.mxu0 0.0
  %378 = vmatpush1.msra.mxu0 0.0
  %379 = vmatprep.subr.mxu0 0.0
  %380 = vmatpush1.msra.mxu0 0.0
  %381 = vmatprep.subr.mxu0 0.0
  %382 = vmatpush1.msra.mxu0 0.0
  %383 = vmatprep.subr.mxu0 0.0
  %384 = vmatpush1.msra.mxu0 0.0
  %385 = vmatprep.subr.mxu0 0.0
  %386 = vmatpush1.msra.mxu0 0.0
  %387 = vmatprep.subr.mxu0 0.0
  %388 = vmatpush1.msra.mxu0 0.0
  %389 = vmatprep.subr.mxu0 0.0
  %390 = vmatpush1.msra.mxu0 0.0
  %391 = vmatprep.subr.mxu0 0.0
  %392 = vmatpush1.msra.mxu0 0.0
  %393 = vmatprep.subr.mxu0 0.0
  %394 = vmatpush1.msra.mxu0 0.0
  %395 = vmatprep.mubr.f32.mxu0 0.0
  %396 = vmatmul.mubr.f32.gmra.mrb[0].mxu0 %v326
  %v397 = vpop.f32.mrb[0].mxu0
  %v398 = vadd.f32 %v323, %v397
  %v399 = vpop.f32.mrb[0].mxu0
  %400 = vmatprep.mubr.f32.mxu0 0.0
  %401 = vmatmul.mubr.f32.gmra.mrb[0].mxu0 %v329
  %v402 = vpop.f32.mrb[0].mxu0
  %v403 = vadd.f32 %v323, %v402
  %v404 = vpop.f32.mrb[0].mxu0
  %405 = vdwg.mxu0
  %v406 = vtanh.pop %v398
  %v407 = vtanh.pop %v403
  %v408 = vlaneseq
  %v409 = vshrl.u32 %v408, 7
  %v410 = vsub.s32 0, %v409
  %v411 = vrot.slane %v319, %v410
  %vm412 = vcmask 523264
  %v414 = vsel %vm412, %v406, 0
  %v417 = vsel %vm412, %v407, 0
  %419 = vmatprep.subr.mxu0 0.0
  %420 = vmatpush1.msra.mxu0 %v311
  %421 = vmatprep.subr.mxu0 0.0
  %422 = vmatpush1.msra.mxu0 %v312
  %423 = vmatprep.subr.mxu0 0.0
  %424 = vmatpush1.msra.mxu0 %v313
  %425 = vmatprep.subr.mxu0 0.0
  %426 = vmatpush1.msra.mxu0 %v314
  %427 = vmatprep.subr.mxu0 0.0
  %428 = vmatpush1.msra.mxu0 %v315
  %429 = vmatprep.subr.mxu0 0.0
  %430 = vmatpush1.msra.mxu0 %v316
  %431 = vmatprep.subr.mxu0 0.0
  %432 = vmatpush1.msra.mxu0 %v317
  %433 = vmatprep.subr.mxu0 0.0
  %434 = vmatpush1.msra.mxu0 %v318
  %435 = vmatprep.subr.mxu0 0.0
  %436 = vmatpush1.msra.mxu0 0.0
  %437 = vmatprep.subr.mxu0 0.0
  %438 = vmatpush1.msra.mxu0 0.0
  %439 = vmatprep.subr.mxu0 0.0
  %440 = vmatpush1.msra.mxu0 0.0
  %441 = vmatprep.subr.mxu0 0.0
  %442 = vmatpush1.msra.mxu0 0.0
  %443 = vmatprep.subr.mxu0 0.0
  %444 = vmatpush1.msra.mxu0 0.0
  %445 = vmatprep.subr.mxu0 0.0
  %446 = vmatpush1.msra.mxu0 0.0
  %447 = vmatprep.subr.mxu0 0.0
  %448 = vmatpush1.msra.mxu0 0.0
  %449 = vmatprep.subr.mxu0 0.0
  %450 = vmatpush1.msra.mxu0 0.0
  %451 = vmatprep.subr.mxu0 0.0
  %452 = vmatpush1.msra.mxu0 0.0
  %453 = vmatprep.subr.mxu0 0.0
  %454 = vmatpush1.msra.mxu0 0.0
  %455 = vmatprep.subr.mxu0 0.0
  %456 = vmatpush1.msra.mxu0 0.0
  %457 = vmatprep.subr.mxu0 0.0
  %458 = vmatpush1.msra.mxu0 0.0
  %459 = vmatprep.subr.mxu0 0.0
  %460 = vmatpush1.msra.mxu0 0.0
  %461 = vmatprep.subr.mxu0 0.0
  %462 = vmatpush1.msra.mxu0 0.0
  %463 = vmatprep.subr.mxu0 0.0
  %464 = vmatpush1.msra.mxu0 0.0
  %465 = vmatprep.subr.mxu0 0.0
  %466 = vmatpush1.msra.mxu0 0.0
  %467 = vmatprep.subr.mxu0 0.0
  %468 = vmatpush1.msra.mxu0 0.0
  %469 = vmatprep.subr.mxu0 0.0
  %470 = vmatpush1.msra.mxu0 0.0
  %471 = vmatprep.subr.mxu0 0.0
  %472 = vmatpush1.msra.mxu0 0.0
  %473 = vmatprep.subr.mxu0 0.0
  %474 = vmatpush1.msra.mxu0 0.0
  %475 = vmatprep.subr.mxu0 0.0
  %476 = vmatpush1.msra.mxu0 0.0
  %477 = vmatprep.subr.mxu0 0.0
  %478 = vmatpush1.msra.mxu0 0.0
  %479 = vmatprep.subr.mxu0 0.0
  %480 = vmatpush1.msra.mxu0 0.0
  %481 = vmatprep.subr.mxu0 0.0
  %482 = vmatpush1.msra.mxu0 0.0
  %483 = vmatprep.mubr.f32.mxu0 0.0
  %484 = vmatmul.mubr.f32.gmra.mrb[0].mxu0 %v414
  %v485 = vpop.f32.mrb[0].mxu0
  %v486 = vadd.f32 %v411, %v485
  %v487 = vpop.f32.mrb[0].mxu0
  %488 = vmatprep.mubr.f32.mxu0 0.0
  %489 = vmatmul.mubr.f32.gmra.mrb[0].mxu0 %v417
  %v490 = vpop.f32.mrb[0].mxu0
  %v491 = vadd.f32 %v411, %v490
  %v492 = vpop.f32.mrb[0].mxu0
  %493 = vdwg.mxu0
  %496 = vrot.lane.b32.xlu0 %v486, 24
  %v497 = vpop.permute.xlu0 %496
  %498 = vrot.lane.b32.xlu0 %v491, 24
  %v499 = vpop.permute.xlu0 %498
  %v502 = vmul.f32 %v17, %v497
  %v503 = vmul.f32 %v17, %v499
  %v504 = vrot.slane %v486, 6
  %v505 = vrot.slane %v491, 6
  %v506 = vsel %vm22, %v504, %v505
  %v508 = vsel %vm22, 0.0, %v504
  %v510 = vrot.slane %v508, 1
  %v511 = vrot.slane %v506, 1
  %v512 = vsel %vm40, %v510, %v511
  %v513 = vrot.slane %v505, 1
  %v514 = vsel %vm40, %v511, %v513
  %515 = vrot.lane.b32.xlu0 %v512, 24
  %v516 = vpop.permute.xlu0 %515
  %517 = vrot.lane.b32.xlu0 %v514, 24
  %v518 = vpop.permute.xlu0 %517
  %v521 = vmul.f32 %v33, %v516
  %v522 = vmul.f32 %v33, %v518
  %v523 = vadd.f32 %v502, %v521
  %v524 = vadd.f32 %v503, %v522
  %525 = vrot.lane.b32.xlu0 %v508, 24
  %v526 = vpop.permute.xlu0 %525
  %527 = vrot.lane.b32.xlu0 %v506, 24
  %v528 = vpop.permute.xlu0 %527
  %v531 = vmul.f32 %v53, %v526
  %v532 = vmul.f32 %v53, %v528
  %v533 = vadd.f32 %v523, %v531
  %v534 = vadd.f32 %v524, %v532
  %v535 = vadd.f32 %v533, %v60
  %v536 = vadd.f32 %v535, %v63
  %538 = vrot.lane.b32.xlu0 %v536, 104
  %v539 = vpop.permute.xlu0 %538
  %vm541 = vcmask 90112
  %542 = vst.msk [vmem:[#allocation3] sm:$0x1] %vm541, %v539
  %v543 = vrot.slane %v536, 5
  %v545 = vmul.f32 %v13, %v543
  %v547 = vrot.slane %v545, 2
  %v549 = vadd.f32 %v533, %v547
  %v550 = vadd.f32 %v549, %v60
  %552 = vrot.lane.b32.xlu0 %v550, 104
  %v553 = vpop.permute.xlu0 %552
  %vm555 = vcmask 91137
  %556 = vst.msk [vmem:[#allocation3] sm:$0x2] %vm555, %v553
  %v557 = vrot.slane %v550, 6
  %v559 = vmul.f32 %v13, %v557
  %v561 = vrot.slane %v559, 1
  %v563 = vadd.f32 %v533, %v561
  %v564 = vrot.slane %v536, 4
  %v566 = vmul.f32 %v13, %v564
  %v568 = vrot.slane %v566, 2
  %v570 = vadd.f32 %v563, %v568
  %572 = vrot.lane.b32.xlu0 %v570, 104
  %v573 = vpop.permute.xlu0 %572
  %vm575 = vcmask 92162
  %576 = vst.msk [vmem:[#allocation3] sm:$0x4] %vm575, %v573
  %v577 = vrot.slane %v570, 7
  %v579 = vmul.f32 %v13, %v577
  %v580 = vadd.f32 %v533, %v579
  %v581 = vrot.slane %v550, 5
  %v583 = vmul.f32 %v13, %v581
  %v585 = vrot.slane %v583, 1
  %v587 = vadd.f32 %v580, %v585
  %589 = vrot.lane.b32.xlu0 %v587, 104
  %v590 = vpop.permute.xlu0 %589
  %vm592 = vcmask 93187
  %593 = vst.msk [vmem:[#allocation3] sm:$0x8] %vm592, %v590
  %v594 = vmul.f32 %v13, %v587
  %v596 = vrot.slane %v594, 7
  %v598 = vadd.f32 %v533, %v596
  %v599 = vrot.slane %v570, 6
  %v601 = vmul.f32 %v13, %v599
  %v602 = vadd.f32 %v598, %v601
  %604 = vrot.lane.b32.xlu0 %v602, 104
  %v605 = vpop.permute.xlu0 %604
  %vm607 = vcmask 94212
  %608 = vst.msk [vmem:[#allocation3] sm:$0x10] %vm607, %v605
  %v609 = vrot.slane %v602, 1
  %v611 = vmul.f32 %v13, %v609
  %v613 = vrot.slane %v611, 6
  %v615 = vadd.f32 %v533, %v613
  %v616 = vrot.slane %v587, 7
  %v618 = vmul.f32 %v13, %v616
  %v620 = vrot.slane %v618, 7
  %v622 = vadd.f32 %v615, %v620
  %624 = vrot.lane.b32.xlu0 %v622, 104
  %v625 = vpop.permute.xlu0 %624
  %vm627 = vcmask 95237
  %628 = vst.msk [vmem:[#allocation3] sm:$0x20] %vm627, %v625
  %v629 = vrot.slane %v622, 2
  %v631 = vmul.f32 %v13, %v629
  %v633 = vrot.slane %v631, 5
  %v635 = vadd.f32 %v533, %v633
  %v636 = vmul.f32 %v13, %v602
  %v638 = vrot.slane %v636, 6
  %v640 = vadd.f32 %v635, %v638
  %642 = vrot.lane.b32.xlu0 %v640, 104
  %v643 = vpop.permute.xlu0 %642
  %vm645 = vcmask 96262
  %646 = vst.msk [vmem:[#allocation3] sm:$0x40] %vm645, %v643
  %v647 = vrot.slane %v640, 3
  %v649 = vmul.f32 %v13, %v647
  %v651 = vrot.slane %v649, 4
  %v653 = vadd.f32 %v533, %v651
  %v654 = vrot.slane %v622, 1
  %v656 = vmul.f32 %v13, %v654
  %v658 = vrot.slane %v656, 5
  %v660 = vadd.f32 %v653, %v658
  %662 = vrot.lane.b32.xlu0 %v660, 104
  %v663 = vpop.permute.xlu0 %662
  %vm665 = vcmask 97287
  %666 = vst.msk [vmem:[#allocation3] sm:$0x80] %vm665, %v663
  %v667 = vrot.slane %v660, 4
  %v669 = vmul.f32 %v13, %v667
  %v671 = vrot.slane %v669, 3
  %v673 = vadd.f32 %v534, %v671
  %v674 = vrot.slane %v640, 2
  %v676 = vmul.f32 %v13, %v674
  %v678 = vrot.slane %v676, 4
  %v680 = vadd.f32 %v673, %v678
  %682 = vrot.lane.b32.xlu0 %v680, 104
  %v683 = vpop.permute.xlu0 %682
  %685 = vst.msk [vmem:[#allocation3 + $0x8] sm:$0x1] %vm541, %v683
  %v686 = vrot.slane %v680, 5
  %v688 = vmul.f32 %v13, %v686
  %v690 = vrot.slane %v688, 2
  %v692 = vadd.f32 %v534, %v690
  %v693 = vrot.slane %v660, 3
  %v695 = vmul.f32 %v13, %v693
  %v697 = vrot.slane %v695, 3
  %v699 = vadd.f32 %v692, %v697
  %701 = vrot.lane.b32.xlu0 %v699, 104
  %v702 = vpop.permute.xlu0 %701
  %704 = vst.msk [vmem:[#allocation3 + $0x8] sm:$0x2] %vm555, %v702
  %v705 = vrot.slane %v699, 6
  %v707 = vmul.f32 %v13, %v705
  %v709 = vrot.slane %v707, 1
  %v711 = vadd.f32 %v534, %v709
  %v712 = vrot.slane %v680, 4
  %v714 = vmul.f32 %v13, %v712
  %v716 = vrot.slane %v714, 2
  %v718 = vadd.f32 %v711, %v716
  %720 = vrot.lane.b32.xlu0 %v718, 104
  %v721 = vpop.permute.xlu0 %720
  %723 = vst.msk [vmem:[#allocation3 + $0x8] sm:$0x4] %vm575, %v721
  %v724 = vrot.slane %v718, 7
  %v726 = vmul.f32 %v13, %v724
  %v727 = vadd.f32 %v534, %v726
  %v728 = vrot.slane %v699, 5
  %v730 = vmul.f32 %v13, %v728
  %v732 = vrot.slane %v730, 1
  %v734 = vadd.f32 %v727, %v732
  %736 = vrot.lane.b32.xlu0 %v734, 104
  %v737 = vpop.permute.xlu0 %736
  %739 = vst.msk [vmem:[#allocation3 + $0x8] sm:$0x8] %vm592, %v737
  %v740 = vmul.f32 %v13, %v734
  %v742 = vrot.slane %v740, 7
  %v744 = vadd.f32 %v534, %v742
  %v745 = vrot.slane %v718, 6
  %v747 = vmul.f32 %v13, %v745
  %v748 = vadd.f32 %v744, %v747
  %750 = vrot.lane.b32.xlu0 %v748, 104
  %v751 = vpop.permute.xlu0 %750
  %753 = vst.msk [vmem:[#allocation3 + $0x8] sm:$0x10] %vm607, %v751
  %v754 = vrot.slane %v748, 1
  %v756 = vmul.f32 %v13, %v754
  %v758 = vrot.slane %v756, 6
  %v760 = vadd.f32 %v534, %v758
  %v761 = vrot.slane %v734, 7
  %v763 = vmul.f32 %v13, %v761
  %v765 = vrot.slane %v763, 7
  %v767 = vadd.f32 %v760, %v765
  %769 = vrot.lane.b32.xlu0 %v767, 104
  %v770 = vpop.permute.xlu0 %769
  %772 = vst.msk [vmem:[#allocation3 + $0x8] sm:$0x20] %vm627, %v770
  %v773 = vrot.slane %v767, 2
  %v775 = vmul.f32 %v13, %v773
  %v777 = vrot.slane %v775, 5
  %v779 = vadd.f32 %v534, %v777
  %v780 = vmul.f32 %v13, %v748
  %v782 = vrot.slane %v780, 6
  %v784 = vadd.f32 %v779, %v782
  %786 = vrot.lane.b32.xlu0 %v784, 104
  %v787 = vpop.permute.xlu0 %786
  %789 = vst.msk [vmem:[#allocation3 + $0x8] sm:$0x40] %vm645, %v787
  %v790 = vrot.slane %v784, 3
  %v792 = vmul.f32 %v13, %v790
  %v794 = vrot.slane %v792, 4
  %v796 = vadd.f32 %v534, %v794
  %v797 = vrot.slane %v767, 1
  %v799 = vmul.f32 %v13, %v797
  %v801 = vrot.slane %v799, 5
  %v803 = vadd.f32 %v796, %v801
  %805 = vrot.lane.b32.xlu0 %v803, 104
  %v806 = vpop.permute.xlu0 %805
  %808 = vst.msk [vmem:[#allocation3 + $0x8] sm:$0x80] %vm665, %v806
  %v809 = vld [vmem:[#allocation3] sm:$0xff]
  %v810 = vld [vmem:[#allocation3 + $0x8] sm:$0xff]
  %813 = vrot.lane.b32.xlu0 %v809, 16
  %v814 = vpop.permute.xlu0 %813
  %815 = vrot.lane.b32.xlu0 %v810, 16
  %v816 = vpop.permute.xlu0 %815
  %v819 = vadd.f32 %v307, %v814
  %v820 = vadd.f32 %v308, %v816
  %821 = vrot.lane.b32.xlu0 %v809, 12
  %v822 = vpop.permute.xlu0 %821
  %823 = vrot.lane.b32.xlu0 %v810, 12
  %v824 = vpop.permute.xlu0 %823
  %v827 = vadd.f32 %v819, %v822
  %v828 = vadd.f32 %v820, %v824
  %829 = vrot.lane.b32.xlu0 %v809, 8
  %v830 = vpop.permute.xlu0 %829
  %831 = vrot.lane.b32.xlu0 %v810, 8
  %v832 = vpop.permute.xlu0 %831
  %v835 = vadd.f32 %v827, %v830
  %v836 = vadd.f32 %v828, %v832
  %839 = vrot.lane.b32.xlu0 %v835, 112
  %v840 = vpop.permute.xlu0 %839
  %841 = vrot.lane.b32.xlu0 %v836, 112
  %v842 = vpop.permute.xlu0 %841
  %vm845 = vcmask 31744
  %846 = vst.msk [vmem:[%s2] sm:$0xff] %vm845, %v840
  %847 = vst.msk [vmem:[%s2 + $0x8] sm:$0xff] %vm845, %v842
  // Predicated region
  $region10: #{dynonet_forward.1} parent=0 // pred_check
    _
  $region11: #{dynonet_forward.1} parent=0 // pred_check_branch
    %849 = sbr.rel (0) target = $region13
  $region12: #{dynonet_forward.1} parent=0 // pred_region
    _
  $region13: #{dynonet_forward.1} parent=0 // pred_fallthru
    _
  // Predicated region
  $region14: #{dynonet_forward.1} parent=0 // pred_check
    _
  $region15: #{dynonet_forward.1} parent=0 // pred_check_branch
    %851 = sbr.rel (0) target = $region17
  $region16: #{dynonet_forward.1} parent=0 // pred_region
    _
  $region17: #{dynonet_forward.1} parent=0 // pred_fallthru
    _

</llo_original>
